<compile_context>
chip_gen: v5e
topology: v5e:2x2
jax: 0.10.0
libtpu: 0.0.40
codegen_flags: <defaults>
</compile_context>

<pallas_src>
import jax
import jax.numpy as jnp
import numpy as np
from jax.experimental import pallas as pl
from jax.experimental.pallas import tpu as pltpu


def _gelu_kernel(x_ref, o_ref):
    x = x_ref[...]
    # tanh-approximate GELU; mul/add on the VPU, tanh on the EUP slot.
    c = 0.7978845608028654  # sqrt(2 / pi)
    inner = c * (x + 0.044715 * (x * x * x))
    o_ref[...] = 0.5 * x * (1.0 + jnp.tanh(inner))


def pallas_gelu(x, *, block_rows=512, cols=512):
    """Elementwise tanh-GELU via a lane-dense Pallas TPU kernel.

    x: any shape / float dtype.  Internally flattened and padded to a
    (rows_padded, cols) slab with cols a multiple of 128 (unmasked vector
    stores) and rows_padded a multiple of the row tile; the 1-D grid walks
    row tiles and is marked "parallel" for megacore sharding.
    """
    orig_shape = x.shape
    n = x.size
    xf = x.reshape(-1)

    rows = -(-n // cols)                                # ceil(n / cols)
    tile_rows = min(block_rows, -(-rows // 8) * 8)      # >= 8, multiple of 8
    rows_padded = -(-rows // tile_rows) * tile_rows
    n_padded = rows_padded * cols
    if n_padded != n:
        xf = jnp.pad(xf, (0, n_padded - n))
    x2 = xf.reshape(rows_padded, cols)

    out2 = pl.pallas_call(
        _gelu_kernel,
        out_shape=jax.ShapeDtypeStruct((rows_padded, cols), x.dtype),
        grid_spec=pltpu.PrefetchScalarGridSpec(
            num_scalar_prefetch=0,
            grid=(rows_padded // tile_rows,),
            in_specs=[pl.BlockSpec((tile_rows, cols), lambda i: (i, 0))],
            out_specs=pl.BlockSpec((tile_rows, cols), lambda i: (i, 0)),
        ),
        compiler_params=pltpu.CompilerParams(
            dimension_semantics=("parallel",)),
    )(x2)

    return out2.reshape(-1)[:n].reshape(orig_shape)


def _gelu_reference(x):
    """Pure-JAX mirror of the PyTorch forward."""
    return 0.5 * x * (1.0 + jnp.tanh(
        jnp.sqrt(2.0 / jnp.pi) * (x + 0.044715 * jnp.power(x, 3))))


if __name__ == "__main__":
    key = jax.random.PRNGKey(0)
    k1, k2 = jax.random.split(key)

    # Small shapes consistent with GPT usage of GELU (batch, seq, hidden).
    x = jax.random.normal(k1, (2, 8, 32), dtype=jnp.float32) * 3.0
    out = jax.block_until_ready(pallas_gelu(x))
    np.testing.assert_allclose(
        np.asarray(out), np.asarray(_gelu_reference(x)), rtol=1e-5, atol=1e-5)

    # Second, non-aligned shape to exercise the pad/slice path.
    y = jax.random.normal(k2, (3, 7, 45), dtype=jnp.float32)
    out_y = jax.block_until_ready(pallas_gelu(y))
    np.testing.assert_allclose(
        np.asarray(out_y), np.asarray(_gelu_reference(y)), rtol=1e-5, atol=1e-5)

    print("KERNEL_OK")
</pallas_src>

<mosaic_0001>
module attributes {stable_mosaic.version = 11 : i64} {
  func.func @_gelu_kernel(%arg0: i32, %arg1: memref<8x512xf32, #tpu.memory_space<vmem>>, %arg2: memref<8x512xf32, #tpu.memory_space<vmem>>) attributes {dimension_semantics = [#tpu.dimension_semantics<parallel>], iteration_bounds = array<i64: 1>, scalar_prefetch = 0 : i64, scratch_operands = 0 : i64, tpu.core_type = #tpu.core_type<tc>, window_params = [{transform_indices = @transform_0, window_bounds = array<i64: 8, 512>}, {transform_indices = @transform_1, window_bounds = array<i64: 8, 512>}]} {
    %c0 = arith.constant 0 : index
    %c0_0 = arith.constant 0 : index
    %0 = vector.load %arg1[%c0, %c0_0] : memref<8x512xf32, #tpu.memory_space<vmem>>, vector<8x512xf32>
    %1 = arith.mulf %0, %0 : vector<8x512xf32>
    %2 = arith.mulf %1, %0 : vector<8x512xf32>
    %cst = arith.constant 4.471500e-02 : f32
    %3 = vector.broadcast %cst : f32 to vector<8x512xf32>
    %4 = arith.mulf %3, %2 : vector<8x512xf32>
    %5 = arith.addf %0, %4 : vector<8x512xf32>
    %cst_1 = arith.constant 0.797884583 : f32
    %6 = vector.broadcast %cst_1 : f32 to vector<8x512xf32>
    %7 = arith.mulf %6, %5 : vector<8x512xf32>
    %cst_2 = arith.constant 5.000000e-01 : f32
    %8 = vector.broadcast %cst_2 : f32 to vector<8x512xf32>
    %9 = arith.mulf %8, %0 : vector<8x512xf32>
    %10 = math.tanh %7 : vector<8x512xf32>
    %cst_3 = arith.constant 1.000000e+00 : f32
    %11 = vector.broadcast %cst_3 : f32 to vector<8x512xf32>
    %12 = arith.addf %11, %10 : vector<8x512xf32>
    %13 = arith.mulf %9, %12 : vector<8x512xf32>
    %c0_4 = arith.constant 0 : index
    %c0_5 = arith.constant 0 : index
    %14 = vector.load %arg2[%c0_4, %c0_5] : memref<8x512xf32, #tpu.memory_space<vmem>>, vector<8x512xf32>
    tpu.vector_store %arg2[%c0_4, %c0_5], %13 {strides = array<i32>} : memref<8x512xf32, #tpu.memory_space<vmem>>, vector<8x512xf32>,
    return
  }
  func.func @transform_0(%arg0: i32) -> (i32, i32) {
    %c0_i32 = arith.constant 0 : i32
    %c0_i32_0 = arith.constant 0 : i32
    return %arg0, %c0_i32 : i32, i32
  }
  func.func @transform_1(%arg0: i32) -> (i32, i32) {
    %c0_i32 = arith.constant 0 : i32
    %c0_i32_0 = arith.constant 0 : i32
    return %arg0, %c0_i32 : i32, i32
  }
}

</mosaic_0001>

<llo_original>
// kernel: tpu_custom_call.1
$region0: #{tpu_custom_call.1}
  #allocation0 [shape = 'u32[]', space=smem, size = 0x4, offset = 0x4, fixed_abs, tag = 'smem constant byte address 0x4 - core index']
  #allocation1 [shape = 'u32[72,128]{1,0:T(1,128)}', space=vmem, size = 0x9000, scoped, tag = 'internal scratch']
  %s0 = inlined_call_operand.hbm [shape: f32[8,512], index: 0, kind: input, shape index: {}]
  %s1 = inlined_call_operand.hbm [shape: f32[8,512], index: 1, kind: output, shape index: {}]
  %s2 = sld [smem:[#allocation0]]
  $region18: #{tpu_custom_call.1} parent=0
    _
  %s4 = ssub.s32 1, %s2
  %s5 = scalar_select 0, %s4, %s2
  $region1: #{tpu_custom_call.1} parent=0
    #allocation2 [shape = 'u8[16384]{0}', space=vmem, size = 0x4000, scoped, tag = 'input window, operand 0, single buffered']
    #allocation3 [shape = 's32[1]{0}', space=sflag, size = 0x4, scoped, tag = 'scoped memory for tpu_custom_call.1']
    #allocation4 [shape = 's32[1]{0}', space=sflag, size = 0x4, scoped, tag = 'scoped memory for tpu_custom_call.1']
    #allocation5 [shape = 'u8[16384]{0}', space=vmem, size = 0x4000, scoped, tag = 'output window, operand 0, single buffered']
    %6 = vsyncpa [#allocation3], 0
    %7 = vsyncpa [#allocation4], 0
    // Predicated region
    $region2: #{tpu_custom_call.1} parent=1 // pred_check
      _
    $region3: #{tpu_custom_call.1} parent=1 // pred_check_branch
      %9 = sbr.rel (0) target = $region5
    $region4: #{tpu_custom_call.1} parent=1 // pred_region
      %11 = vsyncadd [#allocation3], 0
      %s13 = sshll.u32 %s0, 4
      %s14 = int_to_ptr.hbm [resolvable:$true] %s13
      %s15 = sshll.u32 [#allocation2], 4
      %s16 = int_to_ptr.vmem [resolvable:$true] %s15
      %18 = dma.hbm_to_vmem [thread:$0]  %s14, 512, %s16, [#allocation3]
    $region5: #{tpu_custom_call.1} parent=1 // pred_fallthru
      _
    // Predicated region
    $region6: #{tpu_custom_call.1} parent=1 // pred_check
      _
    $region7: #{tpu_custom_call.1} parent=1 // pred_check_branch
      %20 = sbr.rel (0) target = $region9
    $region8: #{tpu_custom_call.1} parent=1 // pred_region
      %22 = dma.done [#allocation3], 512
    $region9: #{tpu_custom_call.1} parent=1 // pred_fallthru
      _
    %v23 = vld [vmem:[#allocation2] sm:$0xff]
    %v24 = vld [vmem:[#allocation2 + $0x8] sm:$0xff]
    %v25 = vld [vmem:[#allocation2 + $0x10] sm:$0xff]
    %v26 = vld [vmem:[#allocation2 + $0x18] sm:$0xff]
    %v27 = vmul.f32 %v23, %v23
    %v28 = vmul.f32 %v24, %v24
    %v29 = vmul.f32 %v25, %v25
    %v30 = vmul.f32 %v26, %v26
    %v31 = vmul.f32 %v27, %v23
    %v32 = vmul.f32 %v28, %v24
    %v33 = vmul.f32 %v29, %v25
    %v34 = vmul.f32 %v30, %v26
    %v35 = vmul.f32 %v31, 0.044715
    %v36 = vmul.f32 %v32, 0.044715
    %v37 = vmul.f32 %v33, 0.044715
    %v38 = vmul.f32 %v34, 0.044715
    %v39 = vadd.f32 %v23, %v35
    %v40 = vadd.f32 %v24, %v36
    %v41 = vadd.f32 %v25, %v37
    %v42 = vadd.f32 %v26, %v38
    %v43 = vmul.f32 %v39, 0.7978846
    %v44 = vmul.f32 %v40, 0.7978846
    %v45 = vmul.f32 %v41, 0.7978846
    %v46 = vmul.f32 %v42, 0.7978846
    %v47 = vmul.f32 %v23, 0.5
    %v48 = vmul.f32 %v24, 0.5
    %v49 = vmul.f32 %v25, 0.5
    %v50 = vmul.f32 %v26, 0.5
    %v51 = vtanh.pop %v43
    %v52 = vtanh.pop %v44
    %v53 = vtanh.pop %v45
    %v54 = vtanh.pop %v46
    %v55 = vadd.f32 %v51, 1.0
    %v56 = vadd.f32 %v52, 1.0
    %v57 = vadd.f32 %v53, 1.0
    %v58 = vadd.f32 %v54, 1.0
    %v59 = vmul.f32 %v47, %v55
    %v60 = vmul.f32 %v48, %v56
    %v61 = vmul.f32 %v49, %v57
    %v62 = vmul.f32 %v50, %v58
    %63 = vst [vmem:[#allocation5] sm:$0xff] %v59
    %64 = vst [vmem:[#allocation5 + $0x8] sm:$0xff] %v60
    %65 = vst [vmem:[#allocation5 + $0x10] sm:$0xff] %v61
    %66 = vst [vmem:[#allocation5 + $0x18] sm:$0xff] %v62
    // Predicated region
    $region10: #{tpu_custom_call.1} parent=1 // pred_check
      _
    $region11: #{tpu_custom_call.1} parent=1 // pred_check_branch
      %68 = sbr.rel (0) target = $region13
    $region12: #{tpu_custom_call.1} parent=1 // pred_region
      %70 = vsyncadd [#allocation4], 0
      %s72 = sshll.u32 [#allocation5], 4
      %s73 = int_to_ptr.vmem [resolvable:$true] %s72
      %s74 = sshll.u32 %s1, 4
      %s75 = int_to_ptr.hbm [resolvable:$true] %s74
      %77 = dma.vmem_to_hbm [thread:$0]  %s73, 512, %s75, [#allocation4]
    $region13: #{tpu_custom_call.1} parent=1 // pred_fallthru
      _
    // Predicated region
    $region14: #{tpu_custom_call.1} parent=1 // pred_check
      _
    $region15: #{tpu_custom_call.1} parent=1 // pred_check_branch
      %79 = sbr.rel (0) target = $region17
    $region16: #{tpu_custom_call.1} parent=1 // pred_region
      %81 = dma.done [#allocation4], 512
    $region17: #{tpu_custom_call.1} parent=1 // pred_fallthru
      _
    %82 = vsyncpa [#allocation3], 1
    %83 = vsyncpa [#allocation4], 1

</llo_original>
